<compile_context>
chip_gen: v5e
topology: v5e:2x2
jax: 0.10.0
libtpu: 0.0.40
codegen_flags: <defaults>
</compile_context>

<pallas_src>
import functools
import math

import jax
import jax.numpy as jnp
from jax import lax
from jax.experimental import pallas as pl
from jax.experimental.pallas import tpu as pltpu


# ------------------------------ Pallas kernel -------------------------------

def _mha_kernel(q_ref, k_ref, v_ref,
                wq_ref, wk_ref, wv_ref, wo_ref,
                bq_ref, bk_ref, bv_ref, bo_ref,
                o_ref):
    """One batch element per grid step; all heads handled inside the kernel.

    q_ref/k_ref/v_ref : (1, L, E) / (1, S, E) bf16 activation blocks
    wq/wk/wv_ref      : (E, E)      bf16  folded (Linear ∘ in_proj) weights
                                           (q-path already carries 1/sqrt(d_k))
    wo_ref            : (H, d_k, E) bf16  out_proj weight rows per head
    bq/bk/bv_ref      : (1, E)      f32   folded biases (q-path pre-scaled)
    bo_ref            : (1, E)      f32   out_proj bias
    o_ref             : (1, L, E)   f32   output block
    """
    num_heads, d_k, E = wo_ref.shape
    L = q_ref.shape[1]

    q = q_ref[0]          # (L, E) bf16
    k = k_ref[0]          # (S, E) bf16
    v = v_ref[0]          # (S, E) bf16

    # Full-width in-projections: bf16 MXU operands, f32 accumulation + bias.
    qh = (jnp.dot(q, wq_ref[...], preferred_element_type=jnp.float32)
          + bq_ref[...]).astype(jnp.bfloat16)                         # (L, E)
    kh = (jnp.dot(k, wk_ref[...], preferred_element_type=jnp.float32)
          + bk_ref[...]).astype(jnp.bfloat16)                         # (S, E)
    vh = (jnp.dot(v, wv_ref[...], preferred_element_type=jnp.float32)
          + bv_ref[...]).astype(jnp.bfloat16)                         # (S, E)

    acc = jnp.zeros((L, E), jnp.float32)
    for h in range(num_heads):                     # static, unrolled
        lo = h * d_k
        qs = qh[:, lo:lo + d_k]                    # (L, d_k) bf16
        ks = kh[:, lo:lo + d_k]                    # (S, d_k) bf16
        vs = vh[:, lo:lo + d_k]                    # (S, d_k) bf16

        # Scores (scale already folded into the q path); softmax stats in f32.
        s = lax.dot_general(qs, ks, (((1,), (1,)), ((), ())),
                            preferred_element_type=jnp.float32)       # (L, S)
        m = jnp.max(s, axis=-1, keepdims=True)
        p = jnp.exp(s - m)                                            # f32
        denom = jnp.sum(p, axis=-1, keepdims=True)                    # (L, 1)
        # TODO(synk): nn.Dropout(p=0.1) on attention weights omitted (eval mode).

        # Unnormalized context, then normalize L×d_k elements via EUP recip.
        ctx = jnp.dot(p.astype(jnp.bfloat16), vs,
                      preferred_element_type=jnp.float32)             # (L, d_k)
        ctx = ctx * pl.reciprocal(denom, approx=True)

        # Output-projection contribution of this head.
        acc = acc + jnp.dot(ctx.astype(jnp.bfloat16), wo_ref[h],
                            preferred_element_type=jnp.float32)       # (L, E)

    o_ref[0] = acc + bo_ref[...]


# ------------------------------- forward pass -------------------------------

def multi_headed_attention2_forward(params, query, key, value, *, num_heads):
    """query/key/value: (L, N, E) / (S, N, E) float32, seq-first like PyTorch."""
    L, N, E = query.shape
    S = key.shape[0]
    assert E % num_heads == 0
    d_k = E // num_heads
    scale = 1.0 / math.sqrt(d_k)

    in_w = params['in_proj_w']       # (3E, E)
    in_b = params['in_proj_b']       # (3E,)

    # Fold linears[i] with the matching slice of the MHA in-projection:
    #   z = (x @ Wl^T + bl) @ Wi^T + bi = x @ (Wi @ Wl)^T + (Wi @ bl + bi)
    # (exact — two affine maps, nothing in between).  The softmax 1/sqrt(d_k)
    # is folded into the q-path weight and bias.
    folded_w, folded_b = [], []
    for i in range(3):
        Wl, bl = params['linears'][i]
        Wi = in_w[i * E:(i + 1) * E]
        bi = in_b[i * E:(i + 1) * E]
        W_eff_t = (Wi @ Wl).T                                        # (E_in, E_out)
        b_eff = Wi @ bl + bi                                         # (E,)
        if i == 0:                                                   # q path: fold scale
            W_eff_t = W_eff_t * scale
            b_eff = b_eff * scale
        folded_w.append(W_eff_t.astype(jnp.bfloat16))
        folded_b.append(b_eff.reshape(1, E).astype(jnp.float32))
    wq, wk, wv = folded_w
    bq, bk, bv = folded_b

    # Output projection: out = concat_h(ctx_h) @ Wo^T + bo = sum_h ctx_h @ Wo^T[h] + bo
    wo_h = params['out_proj_w'].T.reshape(num_heads, d_k, E).astype(jnp.bfloat16)
    bo = params['out_proj_b'].reshape(1, E).astype(jnp.float32)

    # Batch-major bf16 activations (one fused transpose+cast pass, halves DMA).
    q_nle = jnp.transpose(query, (1, 0, 2)).astype(jnp.bfloat16)     # (N, L, E)
    k_nse = jnp.transpose(key, (1, 0, 2)).astype(jnp.bfloat16)       # (N, S, E)
    v_nse = jnp.transpose(value, (1, 0, 2)).astype(jnp.bfloat16)     # (N, S, E)

    const2 = lambda n: (0, 0)
    const3 = lambda n: (0, 0, 0)

    out_nle = pl.pallas_call(
        _mha_kernel,
        out_shape=jax.ShapeDtypeStruct((N, L, E), jnp.float32),
        grid=(N,),
        in_specs=[
            pl.BlockSpec((1, L, E), lambda n: (n, 0, 0)),     # q
            pl.BlockSpec((1, S, E), lambda n: (n, 0, 0)),     # k
            pl.BlockSpec((1, S, E), lambda n: (n, 0, 0)),     # v
            pl.BlockSpec((E, E), const2),                     # Wq (resident)
            pl.BlockSpec((E, E), const2),                     # Wk (resident)
            pl.BlockSpec((E, E), const2),                     # Wv (resident)
            pl.BlockSpec((num_heads, d_k, E), const3),        # Wo (resident)
            pl.BlockSpec((1, E), const2),                     # bq
            pl.BlockSpec((1, E), const2),                     # bk
            pl.BlockSpec((1, E), const2),                     # bv
            pl.BlockSpec((1, E), const2),                     # bo
        ],
        out_specs=pl.BlockSpec((1, L, E), lambda n: (n, 0, 0)),
        compiler_params=pltpu.CompilerParams(
            dimension_semantics=("parallel",)),
    )(q_nle, k_nse, v_nse, wq, wk, wv, wo_h, bq, bk, bv, bo)

    return jnp.transpose(out_nle, (1, 0, 2))                         # (L, N, E)


# ----------------------- parameters & pure-JAX reference ---------------------

def init_params(rng, d_model):
    E = d_model
    keys = jax.random.split(rng, 10)
    s = 1.0 / math.sqrt(E)
    params = {'linears': []}
    for i in range(3):
        W = jax.random.uniform(keys[2 * i], (E, E), jnp.float32, -s, s)
        b = jax.random.uniform(keys[2 * i + 1], (E,), jnp.float32, -s, s)
        params['linears'].append((W, b))
    params['in_proj_w'] = jax.random.uniform(keys[6], (3 * E, E), jnp.float32, -s, s)
    params['in_proj_b'] = jax.random.uniform(keys[7], (3 * E,), jnp.float32, -s, s)
    params['out_proj_w'] = jax.random.uniform(keys[8], (E, E), jnp.float32, -s, s)
    params['out_proj_b'] = jax.random.uniform(keys[9], (E,), jnp.float32, -s, s)
    return params


def mha_reference(params, query, key, value, num_heads):
    """Unfolded pure-JAX f32 reference (mirrors PyTorch eval-mode math)."""
    E = query.shape[-1]
    d_k = E // num_heads
    (Wl0, bl0), (Wl1, bl1), (Wl2, bl2) = params['linears']
    q = query @ Wl0.T + bl0
    k = key @ Wl1.T + bl1
    v = value @ Wl2.T + bl2
    in_w, in_b = params['in_proj_w'], params['in_proj_b']
    q = q @ in_w[:E].T + in_b[:E]
    k = k @ in_w[E:2 * E].T + in_b[E:2 * E]
    v = v @ in_w[2 * E:].T + in_b[2 * E:]
    L, N, _ = q.shape
    S = k.shape[0]
    qh = q.reshape(L, N * num_heads, d_k).transpose(1, 0, 2)
    kh = k.reshape(S, N * num_heads, d_k).transpose(1, 0, 2)
    vh = v.reshape(S, N * num_heads, d_k).transpose(1, 0, 2)
    scores = jnp.einsum('bld,bsd->bls', qh, kh) / math.sqrt(d_k)
    p = jax.nn.softmax(scores, axis=-1)
    ctx = jnp.einsum('bls,bsd->bld', p, vh)
    ctx = ctx.transpose(1, 0, 2).reshape(L, N, E)
    return ctx @ params['out_proj_w'].T + params['out_proj_b']


# ------------------------------------ main -----------------------------------

if __name__ == "__main__":
    # seq=16, batch=2 (>=2 parallel blocks for v7x), d_model=128 (lane-dense
    # output, 128-aligned matmuls), heads=4 -> d_k=32.
    L, S, N, E, H = 16, 16, 2, 128, 4

    rng = jax.random.PRNGKey(0)
    kp, kq, kk, kv = jax.random.split(rng, 4)
    params = init_params(kp, E)

    query = jax.random.normal(kq, (L, N, E), jnp.float32)
    key_in = jax.random.normal(kk, (S, N, E), jnp.float32)
    value = jax.random.normal(kv, (S, N, E), jnp.float32)

    fwd = jax.jit(functools.partial(multi_headed_attention2_forward, num_heads=H))
    out = fwd(params, query, key_in, value)
    out = jax.block_until_ready(out)

    assert out.shape == (L, N, E), out.shape
    assert bool(jnp.all(jnp.isfinite(out)))

    # Loose tolerance: kernel uses bf16 MXU operands with f32 accumulation and
    # an EUP approx reciprocal for the softmax normalization.
    ref = mha_reference(params, query, key_in, value, H)
    max_err = float(jnp.max(jnp.abs(out - ref)))
    assert max_err < 0.1, max_err

    print("KERNEL_OK")
</pallas_src>

<mosaic_0001>
module attributes {stable_mosaic.version = 11 : i64} {
  func.func @_mha_kernel(%arg0: i32, %arg1: memref<1x16x128xbf16, #tpu.memory_space<vmem>>, %arg2: memref<1x16x128xbf16, #tpu.memory_space<vmem>>, %arg3: memref<1x16x128xbf16, #tpu.memory_space<vmem>>, %arg4: memref<128x128xbf16, #tpu.memory_space<vmem>>, %arg5: memref<128x128xbf16, #tpu.memory_space<vmem>>, %arg6: memref<128x128xbf16, #tpu.memory_space<vmem>>, %arg7: memref<4x32x128xbf16, #tpu.memory_space<vmem>>, %arg8: memref<1x128xf32, #tpu.memory_space<vmem>>, %arg9: memref<1x128xf32, #tpu.memory_space<vmem>>, %arg10: memref<1x128xf32, #tpu.memory_space<vmem>>, %arg11: memref<1x128xf32, #tpu.memory_space<vmem>>, %arg12: memref<1x16x128xf32, #tpu.memory_space<vmem>>) attributes {dimension_semantics = [#tpu.dimension_semantics<parallel>], iteration_bounds = array<i64: 2>, scalar_prefetch = 0 : i64, scratch_operands = 0 : i64, tpu.core_type = #tpu.core_type<tc>, window_params = [{transform_indices = @transform_0, window_bounds = array<i64: 1, 16, 128>}, {transform_indices = @transform_1, window_bounds = array<i64: 1, 16, 128>}, {transform_indices = @transform_2, window_bounds = array<i64: 1, 16, 128>}, {pipeline_mode = #tpu.pipeline_mode<synchronous>, transform_indices = @transform_3, window_bounds = array<i64: 128, 128>}, {pipeline_mode = #tpu.pipeline_mode<synchronous>, transform_indices = @transform_4, window_bounds = array<i64: 128, 128>}, {pipeline_mode = #tpu.pipeline_mode<synchronous>, transform_indices = @transform_5, window_bounds = array<i64: 128, 128>}, {pipeline_mode = #tpu.pipeline_mode<synchronous>, transform_indices = @transform_6, window_bounds = array<i64: 4, 32, 128>}, {pipeline_mode = #tpu.pipeline_mode<synchronous>, transform_indices = @transform_7, window_bounds = array<i64: 1, 128>}, {pipeline_mode = #tpu.pipeline_mode<synchronous>, transform_indices = @transform_8, window_bounds = array<i64: 1, 128>}, {pipeline_mode = #tpu.pipeline_mode<synchronous>, transform_indices = @transform_9, window_bounds = array<i64: 1, 128>}, {pipeline_mode = #tpu.pipeline_mode<synchronous>, transform_indices = @transform_10, window_bounds = array<i64: 1, 128>}, {transform_indices = @transform_11, window_bounds = array<i64: 1, 16, 128>}]} {
    %c0 = arith.constant 0 : index
    %c0_0 = arith.constant 0 : index
    %c0_1 = arith.constant 0 : index
    %0 = vector.load %arg1[%c0, %c0_0, %c0_1] : memref<1x16x128xbf16, #tpu.memory_space<vmem>>, vector<1x16x128xbf16>
    %1 = vector.shape_cast %0 : vector<1x16x128xbf16> to vector<16x128xbf16>
    %c0_2 = arith.constant 0 : index
    %c0_3 = arith.constant 0 : index
    %c0_4 = arith.constant 0 : index
    %2 = vector.load %arg2[%c0_2, %c0_3, %c0_4] : memref<1x16x128xbf16, #tpu.memory_space<vmem>>, vector<1x16x128xbf16>
    %3 = vector.shape_cast %2 : vector<1x16x128xbf16> to vector<16x128xbf16>
    %c0_5 = arith.constant 0 : index
    %c0_6 = arith.constant 0 : index
    %c0_7 = arith.constant 0 : index
    %4 = vector.load %arg3[%c0_5, %c0_6, %c0_7] : memref<1x16x128xbf16, #tpu.memory_space<vmem>>, vector<1x16x128xbf16>
    %5 = vector.shape_cast %4 : vector<1x16x128xbf16> to vector<16x128xbf16>
    %c0_8 = arith.constant 0 : index
    %c0_9 = arith.constant 0 : index
    %6 = vector.load %arg4[%c0_8, %c0_9] : memref<128x128xbf16, #tpu.memory_space<vmem>>, vector<128x128xbf16>
    %cst = arith.constant dense<0.000000e+00> : vector<16x128xf32>
    %7 = tpu.matmul %1, %6, %cst {dimension_numbers = #tpu.dot_dimension_numbers<[1], [0], [0], [1], [0, 0, 1, 1], [], []>} : vector<16x128xbf16>, vector<128x128xbf16>, vector<16x128xf32> -> vector<16x128xf32>
    %c0_10 = arith.constant 0 : index
    %c0_11 = arith.constant 0 : index
    %8 = vector.load %arg8[%c0_10, %c0_11] : memref<1x128xf32, #tpu.memory_space<vmem>>, vector<1x128xf32>
    %9 = vector.broadcast %8 : vector<1x128xf32> to vector<16x128xf32>
    %10 = arith.addf %7, %9 : vector<16x128xf32>
    %11 = arith.truncf %10 : vector<16x128xf32> to vector<16x128xbf16>
    %c0_12 = arith.constant 0 : index
    %c0_13 = arith.constant 0 : index
    %12 = vector.load %arg5[%c0_12, %c0_13] : memref<128x128xbf16, #tpu.memory_space<vmem>>, vector<128x128xbf16>
    %cst_14 = arith.constant dense<0.000000e+00> : vector<16x128xf32>
    %13 = tpu.matmul %3, %12, %cst_14 {dimension_numbers = #tpu.dot_dimension_numbers<[1], [0], [0], [1], [0, 0, 1, 1], [], []>} : vector<16x128xbf16>, vector<128x128xbf16>, vector<16x128xf32> -> vector<16x128xf32>
    %c0_15 = arith.constant 0 : index
    %c0_16 = arith.constant 0 : index
    %14 = vector.load %arg9[%c0_15, %c0_16] : memref<1x128xf32, #tpu.memory_space<vmem>>, vector<1x128xf32>
    %15 = vector.broadcast %14 : vector<1x128xf32> to vector<16x128xf32>
    %16 = arith.addf %13, %15 : vector<16x128xf32>
    %17 = arith.truncf %16 : vector<16x128xf32> to vector<16x128xbf16>
    %c0_17 = arith.constant 0 : index
    %c0_18 = arith.constant 0 : index
    %18 = vector.load %arg6[%c0_17, %c0_18] : memref<128x128xbf16, #tpu.memory_space<vmem>>, vector<128x128xbf16>
    %cst_19 = arith.constant dense<0.000000e+00> : vector<16x128xf32>
    %19 = tpu.matmul %5, %18, %cst_19 {dimension_numbers = #tpu.dot_dimension_numbers<[1], [0], [0], [1], [0, 0, 1, 1], [], []>} : vector<16x128xbf16>, vector<128x128xbf16>, vector<16x128xf32> -> vector<16x128xf32>
    %c0_20 = arith.constant 0 : index
    %c0_21 = arith.constant 0 : index
    %20 = vector.load %arg10[%c0_20, %c0_21] : memref<1x128xf32, #tpu.memory_space<vmem>>, vector<1x128xf32>
    %21 = vector.broadcast %20 : vector<1x128xf32> to vector<16x128xf32>
    %22 = arith.addf %19, %21 : vector<16x128xf32>
    %23 = arith.truncf %22 : vector<16x128xf32> to vector<16x128xbf16>
    %cst_22 = arith.constant 0.000000e+00 : f32
    %24 = vector.broadcast %cst_22 : f32 to vector<16x128xf32>
    %25 = vector.extract_strided_slice %11 {offsets = [0, 0], sizes = [16, 32], strides = [1, 1]} : vector<16x128xbf16> to vector<16x32xbf16>
    %26 = vector.extract_strided_slice %17 {offsets = [0, 0], sizes = [16, 32], strides = [1, 1]} : vector<16x128xbf16> to vector<16x32xbf16>
    %27 = vector.extract_strided_slice %23 {offsets = [0, 0], sizes = [16, 32], strides = [1, 1]} : vector<16x128xbf16> to vector<16x32xbf16>
    %cst_23 = arith.constant dense<0.000000e+00> : vector<16x16xf32>
    %28 = tpu.matmul %25, %26, %cst_23 {dimension_numbers = #tpu.dot_dimension_numbers<[1], [1], [0], [0], [0, 0, 1, 0], [], []>} : vector<16x32xbf16>, vector<16x32xbf16>, vector<16x16xf32> -> vector<16x16xf32>
    %cst_24 = arith.constant dense<0xFF800000> : vector<16xf32>
    %29 = vector.multi_reduction <maximumf>, %28, %cst_24 [1] : vector<16x16xf32> to vector<16xf32>
    %30 = vector.shape_cast %29 : vector<16xf32> to vector<16x1xf32>
    %31 = vector.broadcast %30 : vector<16x1xf32> to vector<16x16xf32>
    %32 = arith.subf %28, %31 : vector<16x16xf32>
    %33 = math.exp %32 : vector<16x16xf32>
    %cst_25 = arith.constant dense<0.000000e+00> : vector<16xf32>
    %34 = vector.multi_reduction <add>, %33, %cst_25 [1] : vector<16x16xf32> to vector<16xf32>
    %35 = vector.shape_cast %34 : vector<16xf32> to vector<16x1xf32>
    %36 = arith.truncf %33 : vector<16x16xf32> to vector<16x16xbf16>
    %cst_26 = arith.constant dense<0.000000e+00> : vector<16x32xf32>
    %37 = tpu.matmul %36, %27, %cst_26 {dimension_numbers = #tpu.dot_dimension_numbers<[1], [0], [0], [1], [0, 0, 1, 1], [], []>} : vector<16x16xbf16>, vector<16x32xbf16>, vector<16x32xf32> -> vector<16x32xf32>
    %38 = tpu.reciprocal %35 {approx = true} : vector<16x1xf32> -> vector<16x1xf32>
    %39 = vector.broadcast %38 : vector<16x1xf32> to vector<16x32xf32>
    %40 = arith.mulf %37, %39 : vector<16x32xf32>
    %41 = arith.truncf %40 : vector<16x32xf32> to vector<16x32xbf16>
    %c0_27 = arith.constant 0 : index
    %c0_28 = arith.constant 0 : index
    %c0_29 = arith.constant 0 : index
    %42 = vector.load %arg7[%c0_27, %c0_28, %c0_29] : memref<4x32x128xbf16, #tpu.memory_space<vmem>>, vector<1x32x128xbf16>
    %43 = vector.shape_cast %42 : vector<1x32x128xbf16> to vector<32x128xbf16>
    %cst_30 = arith.constant dense<0.000000e+00> : vector<16x128xf32>
    %44 = tpu.matmul %41, %43, %cst_30 {dimension_numbers = #tpu.dot_dimension_numbers<[1], [0], [0], [1], [0, 0, 1, 1], [], []>} : vector<16x32xbf16>, vector<32x128xbf16>, vector<16x128xf32> -> vector<16x128xf32>
    %45 = arith.addf %24, %44 : vector<16x128xf32>
    %46 = vector.extract_strided_slice %11 {offsets = [0, 32], sizes = [16, 32], strides = [1, 1]} : vector<16x128xbf16> to vector<16x32xbf16>
    %47 = vector.extract_strided_slice %17 {offsets = [0, 32], sizes = [16, 32], strides = [1, 1]} : vector<16x128xbf16> to vector<16x32xbf16>
    %48 = vector.extract_strided_slice %23 {offsets = [0, 32], sizes = [16, 32], strides = [1, 1]} : vector<16x128xbf16> to vector<16x32xbf16>
    %cst_31 = arith.constant dense<0.000000e+00> : vector<16x16xf32>
    %49 = tpu.matmul %46, %47, %cst_31 {dimension_numbers = #tpu.dot_dimension_numbers<[1], [1], [0], [0], [0, 0, 1, 0], [], []>} : vector<16x32xbf16>, vector<16x32xbf16>, vector<16x16xf32> -> vector<16x16xf32>
    %cst_32 = arith.constant dense<0xFF800000> : vector<16xf32>
    %50 = vector.multi_reduction <maximumf>, %49, %cst_32 [1] : vector<16x16xf32> to vector<16xf32>
    %51 = vector.shape_cast %50 : vector<16xf32> to vector<16x1xf32>
    %52 = vector.broadcast %51 : vector<16x1xf32> to vector<16x16xf32>
    %53 = arith.subf %49, %52 : vector<16x16xf32>
    %54 = math.exp %53 : vector<16x16xf32>
    %cst_33 = arith.constant dense<0.000000e+00> : vector<16xf32>
    %55 = vector.multi_reduction <add>, %54, %cst_33 [1] : vector<16x16xf32> to vector<16xf32>
    %56 = vector.shape_cast %55 : vector<16xf32> to vector<16x1xf32>
    %57 = arith.truncf %54 : vector<16x16xf32> to vector<16x16xbf16>
    %cst_34 = arith.constant dense<0.000000e+00> : vector<16x32xf32>
    %58 = tpu.matmul %57, %48, %cst_34 {dimension_numbers = #tpu.dot_dimension_numbers<[1], [0], [0], [1], [0, 0, 1, 1], [], []>} : vector<16x16xbf16>, vector<16x32xbf16>, vector<16x32xf32> -> vector<16x32xf32>
    %59 = tpu.reciprocal %56 {approx = true} : vector<16x1xf32> -> vector<16x1xf32>
    %60 = vector.broadcast %59 : vector<16x1xf32> to vector<16x32xf32>
    %61 = arith.mulf %58, %60 : vector<16x32xf32>
    %62 = arith.truncf %61 : vector<16x32xf32> to vector<16x32xbf16>
    %c1 = arith.constant 1 : index
    %c0_35 = arith.constant 0 : index
    %c0_36 = arith.constant 0 : index
    %63 = vector.load %arg7[%c1, %c0_35, %c0_36] : memref<4x32x128xbf16, #tpu.memory_space<vmem>>, vector<1x32x128xbf16>
    %64 = vector.shape_cast %63 : vector<1x32x128xbf16> to vector<32x128xbf16>
    %cst_37 = arith.constant dense<0.000000e+00> : vector<16x128xf32>
    %65 = tpu.matmul %62, %64, %cst_37 {dimension_numbers = #tpu.dot_dimension_numbers<[1], [0], [0], [1], [0, 0, 1, 1], [], []>} : vector<16x32xbf16>, vector<32x128xbf16>, vector<16x128xf32> -> vector<16x128xf32>
    %66 = arith.addf %45, %65 : vector<16x128xf32>
    %67 = vector.extract_strided_slice %11 {offsets = [0, 64], sizes = [16, 32], strides = [1, 1]} : vector<16x128xbf16> to vector<16x32xbf16>
    %68 = vector.extract_strided_slice %17 {offsets = [0, 64], sizes = [16, 32], strides = [1, 1]} : vector<16x128xbf16> to vector<16x32xbf16>
    %69 = vector.extract_strided_slice %23 {offsets = [0, 64], sizes = [16, 32], strides = [1, 1]} : vector<16x128xbf16> to vector<16x32xbf16>
    %cst_38 = arith.constant dense<0.000000e+00> : vector<16x16xf32>
    %70 = tpu.matmul %67, %68, %cst_38 {dimension_numbers = #tpu.dot_dimension_numbers<[1], [1], [0], [0], [0, 0, 1, 0], [], []>} : vector<16x32xbf16>, vector<16x32xbf16>, vector<16x16xf32> -> vector<16x16xf32>
    %cst_39 = arith.constant dense<0xFF800000> : vector<16xf32>
    %71 = vector.multi_reduction <maximumf>, %70, %cst_39 [1] : vector<16x16xf32> to vector<16xf32>
    %72 = vector.shape_cast %71 : vector<16xf32> to vector<16x1xf32>
    %73 = vector.broadcast %72 : vector<16x1xf32> to vector<16x16xf32>
    %74 = arith.subf %70, %73 : vector<16x16xf32>
    %75 = math.exp %74 : vector<16x16xf32>
    %cst_40 = arith.constant dense<0.000000e+00> : vector<16xf32>
    %76 = vector.multi_reduction <add>, %75, %cst_40 [1] : vector<16x16xf32> to vector<16xf32>
    %77 = vector.shape_cast %76 : vector<16xf32> to vector<16x1xf32>
    %78 = arith.truncf %75 : vector<16x16xf32> to vector<16x16xbf16>
    %cst_41 = arith.constant dense<0.000000e+00> : vector<16x32xf32>
    %79 = tpu.matmul %78, %69, %cst_41 {dimension_numbers = #tpu.dot_dimension_numbers<[1], [0], [0], [1], [0, 0, 1, 1], [], []>} : vector<16x16xbf16>, vector<16x32xbf16>, vector<16x32xf32> -> vector<16x32xf32>
    %80 = tpu.reciprocal %77 {approx = true} : vector<16x1xf32> -> vector<16x1xf32>
    %81 = vector.broadcast %80 : vector<16x1xf32> to vector<16x32xf32>
    %82 = arith.mulf %79, %81 : vector<16x32xf32>
    %83 = arith.truncf %82 : vector<16x32xf32> to vector<16x32xbf16>
    %c2 = arith.constant 2 : index
    %c0_42 = arith.constant 0 : index
    %c0_43 = arith.constant 0 : index
    %84 = vector.load %arg7[%c2, %c0_42, %c0_43] : memref<4x32x128xbf16, #tpu.memory_space<vmem>>, vector<1x32x128xbf16>
    %85 = vector.shape_cast %84 : vector<1x32x128xbf16> to vector<32x128xbf16>
    %cst_44 = arith.constant dense<0.000000e+00> : vector<16x128xf32>
    %86 = tpu.matmul %83, %85, %cst_44 {dimension_numbers = #tpu.dot_dimension_numbers<[1], [0], [0], [1], [0, 0, 1, 1], [], []>} : vector<16x32xbf16>, vector<32x128xbf16>, vector<16x128xf32> -> vector<16x128xf32>
    %87 = arith.addf %66, %86 : vector<16x128xf32>
    %88 = vector.extract_strided_slice %11 {offsets = [0, 96], sizes = [16, 32], strides = [1, 1]} : vector<16x128xbf16> to vector<16x32xbf16>
    %89 = vector.extract_strided_slice %17 {offsets = [0, 96], sizes = [16, 32], strides = [1, 1]} : vector<16x128xbf16> to vector<16x32xbf16>
    %90 = vector.extract_strided_slice %23 {offsets = [0, 96], sizes = [16, 32], strides = [1, 1]} : vector<16x128xbf16> to vector<16x32xbf16>
    %cst_45 = arith.constant dense<0.000000e+00> : vector<16x16xf32>
    %91 = tpu.matmul %88, %89, %cst_45 {dimension_numbers = #tpu.dot_dimension_numbers<[1], [1], [0], [0], [0, 0, 1, 0], [], []>} : vector<16x32xbf16>, vector<16x32xbf16>, vector<16x16xf32> -> vector<16x16xf32>
    %cst_46 = arith.constant dense<0xFF800000> : vector<16xf32>
    %92 = vector.multi_reduction <maximumf>, %91, %cst_46 [1] : vector<16x16xf32> to vector<16xf32>
    %93 = vector.shape_cast %92 : vector<16xf32> to vector<16x1xf32>
    %94 = vector.broadcast %93 : vector<16x1xf32> to vector<16x16xf32>
    %95 = arith.subf %91, %94 : vector<16x16xf32>
    %96 = math.exp %95 : vector<16x16xf32>
    %cst_47 = arith.constant dense<0.000000e+00> : vector<16xf32>
    %97 = vector.multi_reduction <add>, %96, %cst_47 [1] : vector<16x16xf32> to vector<16xf32>
    %98 = vector.shape_cast %97 : vector<16xf32> to vector<16x1xf32>
    %99 = arith.truncf %96 : vector<16x16xf32> to vector<16x16xbf16>
    %cst_48 = arith.constant dense<0.000000e+00> : vector<16x32xf32>
    %100 = tpu.matmul %99, %90, %cst_48 {dimension_numbers = #tpu.dot_dimension_numbers<[1], [0], [0], [1], [0, 0, 1, 1], [], []>} : vector<16x16xbf16>, vector<16x32xbf16>, vector<16x32xf32> -> vector<16x32xf32>
    %101 = tpu.reciprocal %98 {approx = true} : vector<16x1xf32> -> vector<16x1xf32>
    %102 = vector.broadcast %101 : vector<16x1xf32> to vector<16x32xf32>
    %103 = arith.mulf %100, %102 : vector<16x32xf32>
    %104 = arith.truncf %103 : vector<16x32xf32> to vector<16x32xbf16>
    %c3 = arith.constant 3 : index
    %c0_49 = arith.constant 0 : index
    %c0_50 = arith.constant 0 : index
    %105 = vector.load %arg7[%c3, %c0_49, %c0_50] : memref<4x32x128xbf16, #tpu.memory_space<vmem>>, vector<1x32x128xbf16>
    %106 = vector.shape_cast %105 : vector<1x32x128xbf16> to vector<32x128xbf16>
    %cst_51 = arith.constant dense<0.000000e+00> : vector<16x128xf32>
    %107 = tpu.matmul %104, %106, %cst_51 {dimension_numbers = #tpu.dot_dimension_numbers<[1], [0], [0], [1], [0, 0, 1, 1], [], []>} : vector<16x32xbf16>, vector<32x128xbf16>, vector<16x128xf32> -> vector<16x128xf32>
    %108 = arith.addf %87, %107 : vector<16x128xf32>
    %c0_52 = arith.constant 0 : index
    %c0_53 = arith.constant 0 : index
    %109 = vector.load %arg11[%c0_52, %c0_53] : memref<1x128xf32, #tpu.memory_space<vmem>>, vector<1x128xf32>
    %110 = vector.broadcast %109 : vector<1x128xf32> to vector<16x128xf32>
    %111 = arith.addf %108, %110 : vector<16x128xf32>
    %c0_54 = arith.constant 0 : index
    %c0_55 = arith.constant 0 : index
    %c0_56 = arith.constant 0 : index
    %112 = vector.load %arg12[%c0_54, %c0_55, %c0_56] : memref<1x16x128xf32, #tpu.memory_space<vmem>>, vector<1x16x128xf32>
    %113 = vector.shape_cast %112 : vector<1x16x128xf32> to vector<16x128xf32>
    %114 = vector.shape_cast %111 : vector<16x128xf32> to vector<1x16x128xf32>
    tpu.vector_store %arg12[%c0_54, %c0_55, %c0_56], %114 {strides = array<i32>} : memref<1x16x128xf32, #tpu.memory_space<vmem>>, vector<1x16x128xf32>,
    return
  }
  func.func @transform_0(%arg0: i32) -> (i32, i32, i32) {
    %c0_i32 = arith.constant 0 : i32
    %c0_i32_0 = arith.constant 0 : i32
    %c0_i32_1 = arith.constant 0 : i32
    return %arg0, %c0_i32, %c0_i32_0 : i32, i32, i32
  }
  func.func @transform_1(%arg0: i32) -> (i32, i32, i32) {
    %c0_i32 = arith.constant 0 : i32
    %c0_i32_0 = arith.constant 0 : i32
    %c0_i32_1 = arith.constant 0 : i32
    return %arg0, %c0_i32, %c0_i32_0 : i32, i32, i32
  }
  func.func @transform_2(%arg0: i32) -> (i32, i32, i32) {
    %c0_i32 = arith.constant 0 : i32
    %c0_i32_0 = arith.constant 0 : i32
    %c0_i32_1 = arith.constant 0 : i32
    return %arg0, %c0_i32, %c0_i32_0 : i32, i32, i32
  }
  func.func @transform_3(%arg0: i32) -> (i32, i32) {
    %c0_i32 = arith.constant 0 : i32
    %c0_i32_0 = arith.constant 0 : i32
    %c0_i32_1 = arith.constant 0 : i32
    return %c0_i32, %c0_i32_0 : i32, i32
  }
  func.func @transform_4(%arg0: i32) -> (i32, i32) {
    %c0_i32 = arith.constant 0 : i32
    %c0_i32_0 = arith.constant 0 : i32
    %c0_i32_1 = arith.constant 0 : i32
    return %c0_i32, %c0_i32_0 : i32, i32
  }
  func.func @transform_5(%arg0: i32) -> (i32, i32) {
    %c0_i32 = arith.constant 0 : i32
    %c0_i32_0 = arith.constant 0 : i32
    %c0_i32_1 = arith.constant 0 : i32
    return %c0_i32, %c0_i32_0 : i32, i32
  }
  func.func @transform_6(%arg0: i32) -> (i32, i32, i32) {
    %c0_i32 = arith.constant 0 : i32
    %c0_i32_0 = arith.constant 0 : i32
    %c0_i32_1 = arith.constant 0 : i32
    %c0_i32_2 = arith.constant 0 : i32
    return %c0_i32, %c0_i32_0, %c0_i32_1 : i32, i32, i32
  }
  func.func @transform_7(%arg0: i32) -> (i32, i32) {
    %c0_i32 = arith.constant 0 : i32
    %c0_i32_0 = arith.constant 0 : i32
    %c0_i32_1 = arith.constant 0 : i32
    return %c0_i32, %c0_i32_0 : i32, i32
  }
  func.func @transform_8(%arg0: i32) -> (i32, i32) {
    %c0_i32 = arith.constant 0 : i32
    %c0_i32_0 = arith.constant 0 : i32
    %c0_i32_1 = arith.constant 0 : i32
    return %c0_i32, %c0_i32_0 : i32, i32
  }
  func.func @transform_9(%arg0: i32) -> (i32, i32) {
    %c0_i32 = arith.constant 0 : i32
    %c0_i32_0 = arith.constant 0 : i32
    %c0_i32_1 = arith.constant 0 : i32
    return %c0_i32, %c0_i32_0 : i32, i32
  }
  func.func @transform_10(%arg0: i32) -> (i32, i32) {
    %c0_i32 = arith.constant 0 : i32
    %c0_i32_0 = arith.constant 0 : i32
    %c0_i32_1 = arith.constant 0 : i32
    return %c0_i32, %c0_i32_0 : i32, i32
  }
  func.func @transform_11(%arg0: i32) -> (i32, i32, i32) {
    %c0_i32 = arith.constant 0 : i32
    %c0_i32_0 = arith.constant 0 : i32
    %c0_i32_1 = arith.constant 0 : i32
    return %arg0, %c0_i32, %c0_i32_0 : i32, i32, i32
  }
}

</mosaic_0001>

<llo_original>
// kernel: multi_headed_attention2_forward.1
$region0: #{multi_headed_attention2_forward.1}
  #allocation0 [shape = 'u32[]', space=smem, size = 0x4, offset = 0x4, fixed_abs, tag = 'smem constant byte address 0x4 - core index']
  #allocation1 [shape = 'u32[72,128]{1,0:T(1,128)}', space=vmem, size = 0x9000, scoped, tag = 'internal scratch']
  %s0 = inlined_call_operand.vmem [shape: bf16[2,16,128], index: 0, kind: input, shape index: {}]
  %s1 = inlined_call_operand.vmem [shape: bf16[2,16,128], index: 1, kind: input, shape index: {}]
  %s2 = inlined_call_operand.vmem [shape: bf16[2,16,128], index: 2, kind: input, shape index: {}]
  %s3 = inlined_call_operand.vmem [shape: bf16[128,128], index: 3, kind: input, shape index: {}]
  %s4 = inlined_call_operand.vmem [shape: bf16[128,128], index: 4, kind: input, shape index: {}]
  %s5 = inlined_call_operand.vmem [shape: bf16[128,128], index: 5, kind: input, shape index: {}]
  %s6 = inlined_call_operand.vmem [shape: bf16[4,32,128], index: 6, kind: input, shape index: {}]
  %s7 = inlined_call_operand.vmem [shape: f32[1,128], index: 7, kind: input, shape index: {}]
  %s8 = inlined_call_operand.vmem [shape: f32[1,128], index: 8, kind: input, shape index: {}]
  %s9 = inlined_call_operand.vmem [shape: f32[1,128], index: 9, kind: input, shape index: {}]
  %s10 = inlined_call_operand.vmem [shape: f32[1,128], index: 10, kind: input, shape index: {}]
  %s11 = inlined_call_operand.vmem [shape: f32[2,16,128], index: 11, kind: output, shape index: {}]
  %s12 = sld [smem:[#allocation0]]
  $region77: #{multi_headed_attention2_forward.1} parent=0
    _
  %s14 = ssub.s32 1, %s12
  %s15 = scalar_select 0, %s14, %s12
  loop: start=0, step=1, limit=4
  $region2: #{multi_headed_attention2_forward.1} parent=0 // loop_pre_header
    _
  $region3: #{multi_headed_attention2_forward.1} parent=0 // loop_header
    %s17 = sphi 0, %s21
    %p18 = scmp.ge.s32.totalorder %s17, 4
    %s27 = sphi 0, %s29
    %s30 = sphi 0, %s27
    %s31 = sphi 0, %s30
    %s47 = sphi 0, %s31
    %s53 = sphi 0, %s55
    %s56 = sphi 0, %s53
    %s57 = sphi 0, %s56
    %s73 = sphi 0, %s57
    %s79 = sphi 0, %s81
    %s82 = sphi 0, %s79
    %s83 = sphi 0, %s82
    %s99 = sphi 0, %s83
    %s103 = sphi 0, %s103
    %s105 = sphi 0, %s103
    %s106 = sphi 0, %s105
    %s120 = sphi 0, %s106
    %s124 = sphi 0, %s124
    %s126 = sphi 0, %s124
    %s127 = sphi 0, %s126
    %s141 = sphi 0, %s127
    %s145 = sphi 0, %s145
    %s147 = sphi 0, %s145
    %s148 = sphi 0, %s147
    %s162 = sphi 0, %s148
    %s166 = sphi 0, %s166
    %s168 = sphi 0, %s166
    %s169 = sphi 0, %s168
    %s183 = sphi 0, %s169
    %s187 = sphi 0, %s187
    %s189 = sphi 0, %s187
    %s190 = sphi 0, %s189
    %s204 = sphi 0, %s190
    %s208 = sphi 0, %s208
    %s210 = sphi 0, %s208
    %s211 = sphi 0, %s210
    %s225 = sphi 0, %s211
    %s229 = sphi 0, %s229
    %s231 = sphi 0, %s229
    %s232 = sphi 0, %s231
    %s246 = sphi 0, %s232
    %s250 = sphi 0, %s250
    %s252 = sphi 0, %s250
    %s253 = sphi 0, %s252
    %s267 = sphi 0, %s253
    %s273 = sphi 0, %s275
    %s276 = sphi 0, %s273
    %s277 = sphi 0, %s276
    %s293 = sphi 0, %s277
  $region4: #{multi_headed_attention2_forward.1} parent=0 // loop_header_branch
    %20 = sbr.rel (%p18) target = $region8
  $region5: #{multi_headed_attention2_forward.1} parent=0 // loop_body
    %s22 = ssub.s32 %s17, 1
    %s23 = ssub.s32 %s17, 2
    %s24 = sadd.s32 %s17, 1
    %s25 = ssub.s32 %s17, %s24
    %p26 = scmp.eq.s32.totalorder %s25, 0
    %s28 = sadd.s32 %s27, 1
    %s29 = scalar_select %p26, %s27, %s28
    %p32 = pneg %p26
    %p33 = scmp.eq.s32.totalorder %s17, 1
    %p34 = por %p32, %p33
    %p35 = scmp.ne.s32.totalorder %s27, %s30
    %p36 = scmp.eq.s32.totalorder %s17, 0
    %p37 = por %p35, %p36
    %p38 = scmp.ne.s32.totalorder %s27, %s30
    %p39 = scmp.eq.s32.totalorder %s22, 1
    %p40 = por %p38, %p39
    %p41 = scmp.ne.s32.totalorder %s30, %s31
    %p42 = scmp.eq.s32.totalorder %s22, 0
    %p43 = por %p41, %p42
    %p44 = scmp.ne.s32.totalorder %s30, %s31
    %p45 = scmp.eq.s32.totalorder %s23, 1
    %p46 = por %p44, %p45
    %p48 = scmp.ne.s32.totalorder %s31, %s47
    %p49 = scmp.eq.s32.totalorder %s23, 0
    %p50 = por %p48, %p49
    %s51 = ssub.s32 %s17, %s24
    %p52 = scmp.eq.s32.totalorder %s51, 0
    %s54 = sadd.s32 %s53, 1
    %s55 = scalar_select %p52, %s53, %s54
    %p58 = pneg %p52
    %p59 = scmp.eq.s32.totalorder %s17, 1
    %p60 = por %p58, %p59
    %p61 = scmp.ne.s32.totalorder %s53, %s56
    %p62 = scmp.eq.s32.totalorder %s17, 0
    %p63 = por %p61, %p62
    %p64 = scmp.ne.s32.totalorder %s53, %s56
    %p65 = scmp.eq.s32.totalorder %s22, 1
    %p66 = por %p64, %p65
    %p67 = scmp.ne.s32.totalorder %s56, %s57
    %p68 = scmp.eq.s32.totalorder %s22, 0
    %p69 = por %p67, %p68
    %p70 = scmp.ne.s32.totalorder %s56, %s57
    %p71 = scmp.eq.s32.totalorder %s23, 1
    %p72 = por %p70, %p71
    %p74 = scmp.ne.s32.totalorder %s57, %s73
    %p75 = scmp.eq.s32.totalorder %s23, 0
    %p76 = por %p74, %p75
    %s77 = ssub.s32 %s17, %s24
    %p78 = scmp.eq.s32.totalorder %s77, 0
    %s80 = sadd.s32 %s79, 1
    %s81 = scalar_select %p78, %s79, %s80
    %p84 = pneg %p78
    %p85 = scmp.eq.s32.totalorder %s17, 1
    %p86 = por %p84, %p85
    %p87 = scmp.ne.s32.totalorder %s79, %s82
    %p88 = scmp.eq.s32.totalorder %s17, 0
    %p89 = por %p87, %p88
    %p90 = scmp.ne.s32.totalorder %s79, %s82
    %p91 = scmp.eq.s32.totalorder %s22, 1
    %p92 = por %p90, %p91
    %p93 = scmp.ne.s32.totalorder %s82, %s83
    %p94 = scmp.eq.s32.totalorder %s22, 0
    %p95 = por %p93, %p94
    %p96 = scmp.ne.s32.totalorder %s82, %s83
    %p97 = scmp.eq.s32.totalorder %s23, 1
    %p98 = por %p96, %p97
    %p100 = scmp.ne.s32.totalorder %s83, %s99
    %p101 = scmp.eq.s32.totalorder %s23, 0
    %p102 = por %p100, %p101
    %s104 = sadd.s32 %s103, 1
    %p107 = scmp.eq.s32.totalorder %s17, 1
    %p108 = scmp.ne.s32.totalorder %s103, %s105
    %p109 = scmp.eq.s32.totalorder %s17, 0
    %p110 = por %p108, %p109
    %p111 = scmp.ne.s32.totalorder %s103, %s105
    %p112 = scmp.eq.s32.totalorder %s22, 1
    %p113 = por %p111, %p112
    %p114 = scmp.ne.s32.totalorder %s105, %s106
    %p115 = scmp.eq.s32.totalorder %s22, 0
    %p116 = por %p114, %p115
    %p117 = scmp.ne.s32.totalorder %s105, %s106
    %p118 = scmp.eq.s32.totalorder %s23, 1
    %p119 = por %p117, %p118
    %p121 = scmp.ne.s32.totalorder %s106, %s120
    %p122 = scmp.eq.s32.totalorder %s23, 0
    %p123 = por %p121, %p122
    %s125 = sadd.s32 %s124, 1
    %p128 = scmp.eq.s32.totalorder %s17, 1
    %p129 = scmp.ne.s32.totalorder %s124, %s126
    %p130 = scmp.eq.s32.totalorder %s17, 0
    %p131 = por %p129, %p130
    %p132 = scmp.ne.s32.totalorder %s124, %s126
    %p133 = scmp.eq.s32.totalorder %s22, 1
    %p134 = por %p132, %p133
    %p135 = scmp.ne.s32.totalorder %s126, %s127
    %p136 = scmp.eq.s32.totalorder %s22, 0
    %p137 = por %p135, %p136
    %p138 = scmp.ne.s32.totalorder %s126, %s127
    %p139 = scmp.eq.s32.totalorder %s23, 1
    %p140 = por %p138, %p139
    %p142 = scmp.ne.s32.totalorder %s127, %s141
    %p143 = scmp.eq.s32.totalorder %s23, 0
    %p144 = por %p142, %p143
    %s146 = sadd.s32 %s145, 1
    %p149 = scmp.eq.s32.totalorder %s17, 1
    %p150 = scmp.ne.s32.totalorder %s145, %s147
    %p151 = scmp.eq.s32.totalorder %s17, 0
    %p152 = por %p150, %p151
    %p153 = scmp.ne.s32.totalorder %s145, %s147
    %p154 = scmp.eq.s32.totalorder %s22, 1
    %p155 = por %p153, %p154
    %p156 = scmp.ne.s32.totalorder %s147, %s148
    %p157 = scmp.eq.s32.totalorder %s22, 0
    %p158 = por %p156, %p157
    %p159 = scmp.ne.s32.totalorder %s147, %s148
    %p160 = scmp.eq.s32.totalorder %s23, 1
    %p161 = por %p159, %p160
    %p163 = scmp.ne.s32.totalorder %s148, %s162
    %p164 = scmp.eq.s32.totalorder %s23, 0
    %p165 = por %p163, %p164
    %s167 = sadd.s32 %s166, 1
    %p170 = scmp.eq.s32.totalorder %s17, 1
    %p171 = scmp.ne.s32.totalorder %s166, %s168
    %p172 = scmp.eq.s32.totalorder %s17, 0
    %p173 = por %p171, %p172
    %p174 = scmp.ne.s32.totalorder %s166, %s168
    %p175 = scmp.eq.s32.totalorder %s22, 1
    %p176 = por %p174, %p175
    %p177 = scmp.ne.s32.totalorder %s168, %s169
    %p178 = scmp.eq.s32.totalorder %s22, 0
    %p179 = por %p177, %p178
    %p180 = scmp.ne.s32.totalorder %s168, %s169
    %p181 = scmp.eq.s32.totalorder %s23, 1
    %p182 = por %p180, %p181
    %p184 = scmp.ne.s32.totalorder %s169, %s183
    %p185 = scmp.eq.s32.totalorder %s23, 0
    %p186 = por %p184, %p185
    %s188 = sadd.s32 %s187, 1
    %p191 = scmp.eq.s32.totalorder %s17, 1
    %p192 = scmp.ne.s32.totalorder %s187, %s189
    %p193 = scmp.eq.s32.totalorder %s17, 0
    %p194 = por %p192, %p193
    %p195 = scmp.ne.s32.totalorder %s187, %s189
    %p196 = scmp.eq.s32.totalorder %s22, 1
    %p197 = por %p195, %p196
    %p198 = scmp.ne.s32.totalorder %s189, %s190
    %p199 = scmp.eq.s32.totalorder %s22, 0
    %p200 = por %p198, %p199
    %p201 = scmp.ne.s32.totalorder %s189, %s190
    %p202 = scmp.eq.s32.totalorder %s23, 1
    %p203 = por %p201, %p202
    %p205 = scmp.ne.s32.totalorder %s190, %s204
    %p206 = scmp.eq.s32.totalorder %s23, 0
    %p207 = por %p205, %p206
    %s209 = sadd.s32 %s208, 1
    %p212 = scmp.eq.s32.totalorder %s17, 1
    %p213 = scmp.ne.s32.totalorder %s208, %s210
    %p214 = scmp.eq.s32.totalorder %s17, 0
    %p215 = por %p213, %p214
    %p216 = scmp.ne.s32.totalorder %s208, %s210
    %p217 = scmp.eq.s32.totalorder %s22, 1
    %p218 = por %p216, %p217
    %p219 = scmp.ne.s32.totalorder %s210, %s211
    %p220 = scmp.eq.s32.totalorder %s22, 0
    %p221 = por %p219, %p220
    %p222 = scmp.ne.s32.totalorder %s210, %s211
    %p223 = scmp.eq.s32.totalorder %s23, 1
    %p224 = por %p222, %p223
    %p226 = scmp.ne.s32.totalorder %s211, %s225
    %p227 = scmp.eq.s32.totalorder %s23, 0
    %p228 = por %p226, %p227
    %s230 = sadd.s32 %s229, 1
    %p233 = scmp.eq.s32.totalorder %s17, 1
    %p234 = scmp.ne.s32.totalorder %s229, %s231
    %p235 = scmp.eq.s32.totalorder %s17, 0
    %p236 = por %p234, %p235
    %p237 = scmp.ne.s32.totalorder %s229, %s231
    %p238 = scmp.eq.s32.totalorder %s22, 1
    %p239 = por %p237, %p238
    %p240 = scmp.ne.s32.totalorder %s231, %s232
    %p241 = scmp.eq.s32.totalorder %s22, 0
    %p242 = por %p240, %p241
    %p243 = scmp.ne.s32.totalorder %s231, %s232
    %p244 = scmp.eq.s32.totalorder %s23, 1
    %p245 = por %p243, %p244
    %p247 = scmp.ne.s32.totalorder %s232, %s246
    %p248 = scmp.eq.s32.totalorder %s23, 0
    %p249 = por %p247, %p248
    %s251 = sadd.s32 %s250, 1
    %p254 = scmp.eq.s32.totalorder %s17, 1
    %p255 = scmp.ne.s32.totalorder %s250, %s252
    %p256 = scmp.eq.s32.totalorder %s17, 0
    %p257 = por %p255, %p256
    %p258 = scmp.ne.s32.totalorder %s250, %s252
    %p259 = scmp.eq.s32.totalorder %s22, 1
    %p260 = por %p258, %p259
    %p261 = scmp.ne.s32.totalorder %s252, %s253
    %p262 = scmp.eq.s32.totalorder %s22, 0
    %p263 = por %p261, %p262
    %p264 = scmp.ne.s32.totalorder %s252, %s253
    %p265 = scmp.eq.s32.totalorder %s23, 1
    %p266 = por %p264, %p265
    %p268 = scmp.ne.s32.totalorder %s253, %s267
    %p269 = scmp.eq.s32.totalorder %s23, 0
    %p270 = por %p268, %p269
    %s271 = ssub.s32 %s17, %s24
    %p272 = scmp.eq.s32.totalorder %s271, 0
    %s274 = sadd.s32 %s273, 1
    %s275 = scalar_select %p272, %s273, %s274
    %p278 = pneg %p272
    %p279 = scmp.eq.s32.totalorder %s17, 1
    %p280 = por %p278, %p279
    %p281 = scmp.ne.s32.totalorder %s273, %s276
    %p282 = scmp.eq.s32.totalorder %s17, 0
    %p283 = por %p281, %p282
    %p284 = scmp.ne.s32.totalorder %s273, %s276
    %p285 = scmp.eq.s32.totalorder %s22, 1
    %p286 = por %p284, %p285
    %p287 = scmp.ne.s32.totalorder %s276, %s277
    %p288 = scmp.eq.s32.totalorder %s22, 0
    %p289 = por %p287, %p288
    %p290 = scmp.ne.s32.totalorder %s276, %s277
    %p291 = scmp.eq.s32.totalorder %s23, 1
    %p292 = por %p290, %p291
    %p294 = scmp.ne.s32.totalorder %s277, %s293
    %p295 = scmp.eq.s32.totalorder %s23, 0
    %p296 = por %p294, %p295
    %p297 = scmp.le.s32.totalorder 1, %s17
    %p298 = scmp.lt.s32.totalorder %s17, 3
    %p299 = pnand %p297, %p298
    %p300 = pneg %p299
    // Predicated region
    $region9: #{multi_headed_attention2_forward.1} parent=5 // pred_check
      _
    $region10: #{multi_headed_attention2_forward.1} parent=5 // pred_check_branch
      %302 = sbr.rel (%p299) target = $region12
    $region11: #{multi_headed_attention2_forward.1} parent=5 // pred_region
      %s303 = ssub.s32 %s17, 1
      // Predicated region
      $region13: #{multi_headed_attention2_forward.1} parent=11 // pred_check
        %p304 = pneg %p116
      $region14: #{multi_headed_attention2_forward.1} parent=11 // pred_check_branch
        %306 = sbr.rel (%p304) target = $region16
      $region15: #{multi_headed_attention2_forward.1} parent=11 // pred_region
        _
      $region16: #{multi_headed_attention2_forward.1} parent=11 // pred_fallthru
        _
      // Predicated region
      $region17: #{multi_headed_attention2_forward.1} parent=11 // pred_check
        %p307 = pneg %p137
      $region18: #{multi_headed_attention2_forward.1} parent=11 // pred_check_branch
        %309 = sbr.rel (%p307) target = $region20
      $region19: #{multi_headed_attention2_forward.1} parent=11 // pred_region
        _
      $region20: #{multi_headed_attention2_forward.1} parent=11 // pred_fallthru
        _
      // Predicated region
      $region21: #{multi_headed_attention2_forward.1} parent=11 // pred_check
        %p310 = pneg %p158
      $region22: #{multi_headed_attention2_forward.1} parent=11 // pred_check_branch
        %312 = sbr.rel (%p310) target = $region24
      $region23: #{multi_headed_attention2_forward.1} parent=11 // pred_region
        _
      $region24: #{multi_headed_attention2_forward.1} parent=11 // pred_fallthru
        _
      // Predicated region
      $region25: #{multi_headed_attention2_forward.1} parent=11 // pred_check
        %p313 = pneg %p179
      $region26: #{multi_headed_attention2_forward.1} parent=11 // pred_check_branch
        %315 = sbr.rel (%p313) target = $region28
      $region27: #{multi_headed_attention2_forward.1} parent=11 // pred_region
        _
      $region28: #{multi_headed_attention2_forward.1} parent=11 // pred_fallthru
        _
      // Predicated region
      $region29: #{multi_headed_attention2_forward.1} parent=11 // pred_check
        %p316 = pneg %p200
      $region30: #{multi_headed_attention2_forward.1} parent=11 // pred_check_branch
        %318 = sbr.rel (%p316) target = $region32
      $region31: #{multi_headed_attention2_forward.1} parent=11 // pred_region
        _
      $region32: #{multi_headed_attention2_forward.1} parent=11 // pred_fallthru
        _
      // Predicated region
      $region33: #{multi_headed_attention2_forward.1} parent=11 // pred_check
        %p319 = pneg %p221
      $region34: #{multi_headed_attention2_forward.1} parent=11 // pred_check_branch
        %321 = sbr.rel (%p319) target = $region36
      $region35: #{multi_headed_attention2_forward.1} parent=11 // pred_region
        _
      $region36: #{multi_headed_attention2_forward.1} parent=11 // pred_fallthru
        _
      // Predicated region
      $region37: #{multi_headed_attention2_forward.1} parent=11 // pred_check
        %p322 = pneg %p242
      $region38: #{multi_headed_attention2_forward.1} parent=11 // pred_check_branch
        %324 = sbr.rel (%p322) target = $region40
      $region39: #{multi_headed_attention2_forward.1} parent=11 // pred_region
        _
      $region40: #{multi_headed_attention2_forward.1} parent=11 // pred_fallthru
        _
      // Predicated region
      $region41: #{multi_headed_attention2_forward.1} parent=11 // pred_check
        %p325 = pneg %p263
      $region42: #{multi_headed_attention2_forward.1} parent=11 // pred_check_branch
        %327 = sbr.rel (%p325) target = $region44
      $region43: #{multi_headed_attention2_forward.1} parent=11 // pred_region
        _
      $region44: #{multi_headed_attention2_forward.1} parent=11 // pred_fallthru
        _
    $region12: #{multi_headed_attention2_forward.1} parent=5 // pred_fallthru
      _
    %p328 = scmp.lt.s32.totalorder %s17, 2
    // Predicated region
    $region45: #{multi_headed_attention2_forward.1} parent=5 // pred_check
      %p329 = pneg %p328
    $region46: #{multi_headed_attention2_forward.1} parent=5 // pred_check_branch
      %331 = sbr.rel (%p329) target = $region48
    $region47: #{multi_headed_attention2_forward.1} parent=5 // pred_region
      // Predicated region
      $region49: #{multi_headed_attention2_forward.1} parent=47 // pred_check
        %p332 = pneg %p37
      $region50: #{multi_headed_attention2_forward.1} parent=47 // pred_check_branch
        %334 = sbr.rel (%p332) target = $region52
      $region51: #{multi_headed_attention2_forward.1} parent=47 // pred_region
        %p335 = scmp.lt.s32.totalorder %s17, 1
        %s336 = scalar_select %p335, %s17, 1
        %s337 = smul.addr %s336, 2
        %s338 = smul.addr %s337, 4
        %s339 = scalar_lea.vmem %s0, %s338
      $region52: #{multi_headed_attention2_forward.1} parent=47 // pred_fallthru
        _
      // Predicated region
      $region53: #{multi_headed_attention2_forward.1} parent=47 // pred_check
        %p340 = pneg %p63
      $region54: #{multi_headed_attention2_forward.1} parent=47 // pred_check_branch
        %342 = sbr.rel (%p340) target = $region56
      $region55: #{multi_headed_attention2_forward.1} parent=47 // pred_region
        %p343 = scmp.lt.s32.totalorder %s17, 1
        %s344 = scalar_select %p343, %s17, 1
        %s345 = smul.addr %s344, 2
        %s346 = smul.addr %s345, 4
        %s347 = scalar_lea.vmem %s1, %s346
      $region56: #{multi_headed_attention2_forward.1} parent=47 // pred_fallthru
        _
      // Predicated region
      $region57: #{multi_headed_attention2_forward.1} parent=47 // pred_check
        %p348 = pneg %p89
      $region58: #{multi_headed_attention2_forward.1} parent=47 // pred_check_branch
        %350 = sbr.rel (%p348) target = $region60
      $region59: #{multi_headed_attention2_forward.1} parent=47 // pred_region
        %p351 = scmp.lt.s32.totalorder %s17, 1
        %s352 = scalar_select %p351, %s17, 1
        %s353 = smul.addr %s352, 2
        %s354 = smul.addr %s353, 4
        %s355 = scalar_lea.vmem %s2, %s354
      $region60: #{multi_headed_attention2_forward.1} parent=47 // pred_fallthru
        _
    $region48: #{multi_headed_attention2_forward.1} parent=5 // pred_fallthru
      _
    %p356 = scmp.le.s32.totalorder 1, %s17
    %p357 = scmp.lt.s32.totalorder %s17, 3
    %p358 = pnand %p356, %p357
    %p359 = pneg %p358
    // Predicated region
    $region61: #{multi_headed_attention2_forward.1} parent=5 // pred_check
      _
    $region62: #{multi_headed_attention2_forward.1} parent=5 // pred_check_branch
      %361 = sbr.rel (%p358) target = $region64
    $region63: #{multi_headed_attention2_forward.1} parent=5 // pred_region
      %s362 = ssub.s32 %s17, 1
      %p363 = scmp.lt.s32.totalorder %s22, 1
      %s364 = scalar_select %p363, %s22, 1
      %s365 = smul.addr %s364, 2
      %s366 = smul.addr %s365, 4
      %s367 = scalar_lea.vmem %s0, %s366
      %p368 = pneg %p43
      %p369 = pneg %p40
      %p370 = scmp.lt.s32.totalorder %s22, 1
      %s371 = scalar_select %p370, %s22, 1
      %s372 = smul.addr %s371, 2
      %s373 = smul.addr %s372, 4
      %s374 = scalar_lea.vmem %s1, %s373
      %p375 = pneg %p69
      %p376 = pneg %p66
      %p377 = scmp.lt.s32.totalorder %s22, 1
      %s378 = scalar_select %p377, %s22, 1
      %s379 = smul.addr %s378, 2
      %s380 = smul.addr %s379, 4
      %s381 = scalar_lea.vmem %s2, %s380
      %p382 = pneg %p95
      %p383 = pneg %p92
      %p384 = pneg %p116
      %p385 = pneg %p113
      %p386 = pneg %p137
      %p387 = pneg %p134
      %p388 = pneg %p158
      %p389 = pneg %p155
      %p390 = pneg %p179
      %p391 = pneg %p176
      %p392 = pneg %p200
      %p393 = pneg %p197
      %p394 = pneg %p221
      %p395 = pneg %p218
      %p396 = pneg %p242
      %p397 = pneg %p239
      %p398 = pneg %p263
      %p399 = pneg %p260
      %p400 = pneg %p289
      %p401 = pneg %p286
      %p402 = scmp.lt.s32.totalorder %s22, 1
      %s403 = scalar_select %p402, %s22, 1
      %s404 = smul.addr %s403, 2
      %s405 = smul.addr %s404, 8
      %s406 = scalar_lea.vmem %s11, %s405
      %p407 = scmp.lt.s32.totalorder %s22, 1
      %s408 = scalar_select %p407, %s22, 1
      %s409 = smul.addr %s408, 2
      %s410 = smul.addr %s409, 4
      %s411 = scalar_lea.vmem %s0, %s410
      %p412 = scmp.lt.s32.totalorder %s22, 1
      %s413 = scalar_select %p412, %s22, 1
      %s414 = smul.addr %s413, 2
      %s415 = smul.addr %s414, 4
      %s416 = scalar_lea.vmem %s1, %s415
      %p417 = scmp.lt.s32.totalorder %s22, 1
      %s418 = scalar_select %p417, %s22, 1
      %s419 = smul.addr %s418, 2
      %s420 = smul.addr %s419, 4
      %s421 = scalar_lea.vmem %s2, %s420
      %p422 = scmp.lt.s32.totalorder %s22, 1
      %s423 = scalar_select %p422, %s22, 1
      %s424 = smul.addr %s423, 2
      %s425 = smul.addr %s424, 8
      %s426 = scalar_lea.vmem %s11, %s425
      %v428 = vld [vmem:[%s411] sm:$0xf]
      %v429 = vld [vmem:[%s411 + $0x4] sm:$0xf]
      %v430 = vld [vmem:[%s416] sm:$0xf]
      %v431 = vld [vmem:[%s416 + $0x4] sm:$0xf]
      %v432 = vld [vmem:[%s421] sm:$0xf]
      %v433 = vld [vmem:[%s421 + $0x4] sm:$0xf]
      %v434 = vld [vmem:[%s3] sm:$0xf]
      %v435 = vld [vmem:[%s3 + $0x4] sm:$0xf]
      %v436 = vld [vmem:[%s3 + $0x8] sm:$0xf]
      %v437 = vld [vmem:[%s3 + $0xc] sm:$0xf]
      %v438 = vld [vmem:[%s3 + $0x10] sm:$0xf]
      %v439 = vld [vmem:[%s3 + $0x14] sm:$0xf]
      %v440 = vld [vmem:[%s3 + $0x18] sm:$0xf]
      %v441 = vld [vmem:[%s3 + $0x1c] sm:$0xf]
      %v442 = vld [vmem:[%s3 + $0x20] sm:$0xf]
      %v443 = vld [vmem:[%s3 + $0x24] sm:$0xf]
      %v444 = vld [vmem:[%s3 + $0x28] sm:$0xf]
      %v445 = vld [vmem:[%s3 + $0x2c] sm:$0xf]
      %v446 = vld [vmem:[%s3 + $0x30] sm:$0xf]
      %v447 = vld [vmem:[%s3 + $0x34] sm:$0xf]
      %v448 = vld [vmem:[%s3 + $0x38] sm:$0xf]
      %v449 = vld [vmem:[%s3 + $0x3c] sm:$0xf]
      %v450 = vld [vmem:[%s7] sm:$0x1]
      %v452 = vperm.slane %v450, 0
      %v456 = vunpack.c.l.b16 %v428
      %v457 = vunpack.c.l.b16 %v429
      %v458 = vpack.c.b16 %v457, %v456
      %v476 = vunpack.c.l.b16 %v434
      %v477 = vunpack.c.l.b16 %v435
      %v478 = vunpack.c.l.b16 %v436
      %v479 = vunpack.c.l.b16 %v437
      %v480 = vunpack.c.l.b16 %v438
      %v481 = vunpack.c.l.b16 %v439
      %v482 = vunpack.c.l.b16 %v440
      %v483 = vunpack.c.l.b16 %v441
      %v484 = vunpack.c.l.b16 %v442
      %v485 = vunpack.c.l.b16 %v443
      %v486 = vunpack.c.l.b16 %v444
      %v487 = vunpack.c.l.b16 %v445
      %v488 = vunpack.c.l.b16 %v446
      %v489 = vunpack.c.l.b16 %v447
      %v490 = vunpack.c.l.b16 %v448
      %v491 = vunpack.c.l.b16 %v449
      %v492 = vpack.c.b16 %v477, %v476
      %v493 = vpack.c.b16 %v479, %v478
      %v494 = vpack.c.b16 %v481, %v480
      %v495 = vpack.c.b16 %v483, %v482
      %v496 = vpack.c.b16 %v485, %v484
      %v497 = vpack.c.b16 %v487, %v486
      %v498 = vpack.c.b16 %v489, %v488
      %v499 = vpack.c.b16 %v491, %v490
      %508 = vmatpush.bf16.msra.mxu0 %v499
      %509 = vmatpush.bf16.msra.mxu0 %v498
      %510 = vmatpush.bf16.msra.mxu0 %v497
      %511 = vmatpush.bf16.msra.mxu0 %v496
      %512 = vmatpush.bf16.msra.mxu0 %v495
      %513 = vmatpush.bf16.msra.mxu0 %v494
      %514 = vmatpush.bf16.msra.mxu0 %v493
      %515 = vmatpush.bf16.msra.mxu0 %v492
      %516 = vmatmul.bf16.gmra.mxu0 %v458
      %v517 = vpop.f32.mrf.mxu0
      %v518 = vadd.f32 %v452, %v517
      %v519 = vpop.f32.mrf.mxu0
      %v520 = vadd.f32 %v452, %v519
      %521 = vdwg.mxu0
      %v522 = vpack.c.bf16 %v518, %v518
      %v523 = vpack.c.bf16 %v520, %v520
      %v524 = vld [vmem:[%s4] sm:$0xf]
      %v525 = vld [vmem:[%s4 + $0x4] sm:$0xf]
      %v526 = vld [vmem:[%s4 + $0x8] sm:$0xf]
      %v527 = vld [vmem:[%s4 + $0xc] sm:$0xf]
      %v528 = vld [vmem:[%s4 + $0x10] sm:$0xf]
      %v529 = vld [vmem:[%s4 + $0x14] sm:$0xf]
      %v530 = vld [vmem:[%s4 + $0x18] sm:$0xf]
      %v531 = vld [vmem:[%s4 + $0x1c] sm:$0xf]
      %v532 = vld [vmem:[%s4 + $0x20] sm:$0xf]
      %v533 = vld [vmem:[%s4 + $0x24] sm:$0xf]
      %v534 = vld [vmem:[%s4 + $0x28] sm:$0xf]
      %v535 = vld [vmem:[%s4 + $0x2c] sm:$0xf]
      %v536 = vld [vmem:[%s4 + $0x30] sm:$0xf]
      %v537 = vld [vmem:[%s4 + $0x34] sm:$0xf]
      %v538 = vld [vmem:[%s4 + $0x38] sm:$0xf]
      %v539 = vld [vmem:[%s4 + $0x3c] sm:$0xf]
      %v540 = vld [vmem:[%s8] sm:$0x1]
      %v542 = vperm.slane %v540, 0
      %v546 = vunpack.c.l.b16 %v430
      %v547 = vunpack.c.l.b16 %v431
      %v548 = vpack.c.b16 %v547, %v546
      %v566 = vunpack.c.l.b16 %v524
      %v567 = vunpack.c.l.b16 %v525
      %v568 = vunpack.c.l.b16 %v526
      %v569 = vunpack.c.l.b16 %v527
      %v570 = vunpack.c.l.b16 %v528
      %v571 = vunpack.c.l.b16 %v529
      %v572 = vunpack.c.l.b16 %v530
      %v573 = vunpack.c.l.b16 %v531
      %v574 = vunpack.c.l.b16 %v532
      %v575 = vunpack.c.l.b16 %v533
      %v576 = vunpack.c.l.b16 %v534
      %v577 = vunpack.c.l.b16 %v535
      %v578 = vunpack.c.l.b16 %v536
      %v579 = vunpack.c.l.b16 %v537
      %v580 = vunpack.c.l.b16 %v538
      %v581 = vunpack.c.l.b16 %v539
      %v582 = vpack.c.b16 %v567, %v566
      %v583 = vpack.c.b16 %v569, %v568
      %v584 = vpack.c.b16 %v571, %v570
      %v585 = vpack.c.b16 %v573, %v572
      %v586 = vpack.c.b16 %v575, %v574
      %v587 = vpack.c.b16 %v577, %v576
      %v588 = vpack.c.b16 %v579, %v578
      %v589 = vpack.c.b16 %v581, %v580
      %598 = vmatpush.bf16.msra.mxu0 %v589
      %599 = vmatpush.bf16.msra.mxu0 %v588
      %600 = vmatpush.bf16.msra.mxu0 %v587
      %601 = vmatpush.bf16.msra.mxu0 %v586
      %602 = vmatpush.bf16.msra.mxu0 %v585
      %603 = vmatpush.bf16.msra.mxu0 %v584
      %604 = vmatpush.bf16.msra.mxu0 %v583
      %605 = vmatpush.bf16.msra.mxu0 %v582
      %606 = vmatmul.bf16.gmra.mxu0 %v548
      %v607 = vpop.f32.mrf.mxu0
      %v608 = vadd.f32 %v542, %v607
      %v609 = vpop.f32.mrf.mxu0
      %v610 = vadd.f32 %v542, %v609
      %611 = vdwg.mxu0
      %v612 = vpack.c.bf16 %v608, %v608
      %v613 = vpack.c.bf16 %v610, %v610
      %v614 = vld [vmem:[%s5] sm:$0xf]
      %v615 = vld [vmem:[%s5 + $0x4] sm:$0xf]
      %v616 = vld [vmem:[%s5 + $0x8] sm:$0xf]
      %v617 = vld [vmem:[%s5 + $0xc] sm:$0xf]
      %v618 = vld [vmem:[%s5 + $0x10] sm:$0xf]
      %v619 = vld [vmem:[%s5 + $0x14] sm:$0xf]
      %v620 = vld [vmem:[%s5 + $0x18] sm:$0xf]
      %v621 = vld [vmem:[%s5 + $0x1c] sm:$0xf]
      %v622 = vld [vmem:[%s5 + $0x20] sm:$0xf]
      %v623 = vld [vmem:[%s5 + $0x24] sm:$0xf]
      %v624 = vld [vmem:[%s5 + $0x28] sm:$0xf]
      %v625 = vld [vmem:[%s5 + $0x2c] sm:$0xf]
      %v626 = vld [vmem:[%s5 + $0x30] sm:$0xf]
      %v627 = vld [vmem:[%s5 + $0x34] sm:$0xf]
      %v628 = vld [vmem:[%s5 + $0x38] sm:$0xf]
      %v629 = vld [vmem:[%s5 + $0x3c] sm:$0xf]
      %v630 = vld [vmem:[%s9] sm:$0x1]
      %v632 = vperm.slane %v630, 0
      %v636 = vunpack.c.l.b16 %v432
      %v637 = vunpack.c.l.b16 %v433
      %v638 = vpack.c.b16 %v637, %v636
      %v656 = vunpack.c.l.b16 %v614
      %v657 = vunpack.c.l.b16 %v615
      %v658 = vunpack.c.l.b16 %v616
      %v659 = vunpack.c.l.b16 %v617
      %v660 = vunpack.c.l.b16 %v618
      %v661 = vunpack.c.l.b16 %v619
      %v662 = vunpack.c.l.b16 %v620
      %v663 = vunpack.c.l.b16 %v621
      %v664 = vunpack.c.l.b16 %v622
      %v665 = vunpack.c.l.b16 %v623
      %v666 = vunpack.c.l.b16 %v624
      %v667 = vunpack.c.l.b16 %v625
      %v668 = vunpack.c.l.b16 %v626
      %v669 = vunpack.c.l.b16 %v627
      %v670 = vunpack.c.l.b16 %v628
      %v671 = vunpack.c.l.b16 %v629
      %v672 = vpack.c.b16 %v657, %v656
      %v673 = vpack.c.b16 %v659, %v658
      %v674 = vpack.c.b16 %v661, %v660
      %v675 = vpack.c.b16 %v663, %v662
      %v676 = vpack.c.b16 %v665, %v664
      %v677 = vpack.c.b16 %v667, %v666
      %v678 = vpack.c.b16 %v669, %v668
      %v679 = vpack.c.b16 %v671, %v670
      %688 = vmatpush.bf16.msra.mxu0 %v679
      %689 = vmatpush.bf16.msra.mxu0 %v678
      %690 = vmatpush.bf16.msra.mxu0 %v677
      %691 = vmatpush.bf16.msra.mxu0 %v676
      %692 = vmatpush.bf16.msra.mxu0 %v675
      %693 = vmatpush.bf16.msra.mxu0 %v674
      %694 = vmatpush.bf16.msra.mxu0 %v673
      %695 = vmatpush.bf16.msra.mxu0 %v672
      %696 = vmatmul.bf16.gmra.mxu0 %v638
      %v697 = vpop.f32.mrf.mxu0
      %v698 = vadd.f32 %v632, %v697
      %v699 = vpop.f32.mrf.mxu0
      %v700 = vadd.f32 %v632, %v699
      %701 = vdwg.mxu0
      %v702 = vpack.c.bf16 %v698, %v698
      %v703 = vpack.c.bf16 %v700, %v700
      %v706 = vunpack.c.l.b16 %v522
      %v707 = vunpack.c.l.b16 %v523
      %v708 = vpack.c.b16 %v707, %v706
      %v711 = vunpack.c.l.b16 %v612
      %v712 = vunpack.c.l.b16 %v613
      %v713 = vpack.c.b16 %v712, %v711
      %vm714 = vcmask 261120
      %v716 = vsel %vm714, %v708, 0
      %v719 = vsel %vm714, %v713, 0
      %721 = vmatpush.bf16.xpose.msra.mxu0 0
      %722 = vmatpush.bf16.xpose.msra.mxu0 0
      %723 = vmatpush.bf16.xpose.msra.mxu0 0
      %724 = vmatpush.bf16.xpose.msra.mxu0 0
      %725 = vmatpush.bf16.xpose.msra.mxu0 0
      %726 = vmatpush.bf16.xpose.msra.mxu0 0
      %727 = vmatpush.bf16.xpose.msra.mxu0 0
      %728 = vmatpush.bf16.xpose.msra.mxu0 %v719
      %729 = vmatmul.bf16.gmra.mxu0 %v716
      %v730 = vpop.f32.mrf.mxu0
      %v731 = vadd.f32 0.0, %v730
      %v732 = vpop.f32.mrf.mxu0
      %v733 = vadd.f32 0.0, %v732
      %734 = vdwg.mxu0
      %vm735 = vcmask 130048
      %v736 = vsel %vm735, %v731, -inf
      %737 = vmax.xlane.f32.xlu0 %v736
      %v738 = vpop.xlane.xlu0 %737
      %v739 = vsel %vm735, %v733, -inf
      %740 = vmax.xlane.f32.xlu0 %v739
      %v741 = vpop.xlane.xlu0 %740
      %v742 = vsub.f32 %v731, %v738
      %v743 = vsub.f32 %v733, %v741
      %v744 = vmul.f32 %v742, 1.442695
      %v745 = vpow.pop %v744
      %v746 = vmul.f32 %v743, 1.442695
      %v747 = vpow.pop %v746
      %v748 = vsel %vm735, %v745, 0.0
      %749 = vadd.xlane.f32.xlu0 %v748
      %v750 = vpop.xlane.xlu0 %749
      %v751 = vsel %vm735, %v747, 0.0
      %752 = vadd.xlane.f32.xlu0 %v751
      %v753 = vpop.xlane.xlu0 %752
      %v754 = vpack.c.bf16 %v747, %v745
      %v757 = vunpack.c.l.b16 %v702
      %v758 = vunpack.c.l.b16 %v703
      %v759 = vpack.c.b16 %v758, %v757
      %v762 = vsel %vm735, %v754, 0
      %764 = vmatpush.bf16.msra.mxu0 0
      %765 = vmatpush.bf16.msra.mxu0 0
      %766 = vmatpush.bf16.msra.mxu0 0
      %767 = vmatpush.bf16.msra.mxu0 0
      %768 = vmatpush.bf16.msra.mxu0 0
      %769 = vmatpush.bf16.msra.mxu0 0
      %770 = vmatpush.bf16.msra.mxu0 0
      %771 = vmatpush.bf16.msra.mxu0 %v759
      %772 = vmatmul.bf16.gmra.mxu0 %v762
      %v773 = vpop.f32.mrf.mxu0
      %v774 = vadd.f32 0.0, %v773
      %v775 = vpop.f32.mrf.mxu0
      %v776 = vadd.f32 0.0, %v775
      %777 = vdwg.mxu0
      %v778 = vrcp.pop %v750
      %v779 = vrcp.pop %v753
      %v780 = vmul.f32 %v774, %v778
      %v781 = vmul.f32 %v776, %v779
      %v782 = vpack.c.bf16 %v781, %v780
      %v783 = vld [vmem:[%s6] sm:$0xf]
      %v784 = vld [vmem:[%s6 + $0x4] sm:$0xf]
      %v785 = vld [vmem:[%s6 + $0x8] sm:$0xf]
      %v786 = vld [vmem:[%s6 + $0xc] sm:$0xf]
      %787 = vrot.lane.b32.xlu0 %v708, 96
      %v788 = vpop.permute.xlu0 %787
      %789 = vrot.lane.b32.xlu0 %v713, 96
      %v790 = vpop.permute.xlu0 %789
      %v792 = vsel %vm714, %v788, 0
      %v795 = vsel %vm714, %v790, 0
      %797 = vmatpush.bf16.xpose.msra.mxu0 0
      %798 = vmatpush.bf16.xpose.msra.mxu0 0
      %799 = vmatpush.bf16.xpose.msra.mxu0 0
      %800 = vmatpush.bf16.xpose.msra.mxu0 0
      %801 = vmatpush.bf16.xpose.msra.mxu0 0
      %802 = vmatpush.bf16.xpose.msra.mxu0 0
      %803 = vmatpush.bf16.xpose.msra.mxu0 0
      %804 = vmatpush.bf16.xpose.msra.mxu0 %v795
      %805 = vmatmul.bf16.gmra.mxu0 %v792
      %v806 = vpop.f32.mrf.mxu0
      %v807 = vadd.f32 0.0, %v806
      %v808 = vpop.f32.mrf.mxu0
      %v809 = vadd.f32 0.0, %v808
      %810 = vdwg.mxu0
      %v811 = vsel %vm735, %v807, -inf
      %812 = vmax.xlane.f32.xlu0 %v811
      %v813 = vpop.xlane.xlu0 %812
      %v814 = vsel %vm735, %v809, -inf
      %815 = vmax.xlane.f32.xlu0 %v814
      %v816 = vpop.xlane.xlu0 %815
      %v817 = vsub.f32 %v807, %v813
      %v818 = vsub.f32 %v809, %v816
      %v819 = vmul.f32 %v817, 1.442695
      %v820 = vpow.pop %v819
      %v821 = vmul.f32 %v818, 1.442695
      %v822 = vpow.pop %v821
      %v823 = vsel %vm735, %v820, 0.0
      %824 = vadd.xlane.f32.xlu0 %v823
      %v825 = vpop.xlane.xlu0 %824
      %v826 = vsel %vm735, %v822, 0.0
      %827 = vadd.xlane.f32.xlu0 %v826
      %v828 = vpop.xlane.xlu0 %827
      %v829 = vpack.c.bf16 %v822, %v820
      %830 = vrot.lane.b32.xlu0 %v759, 96
      %v831 = vpop.permute.xlu0 %830
      %v834 = vsel %vm735, %v829, 0
      %836 = vmatpush.bf16.msra.mxu0 0
      %837 = vmatpush.bf16.msra.mxu0 0
      %838 = vmatpush.bf16.msra.mxu0 0
      %839 = vmatpush.bf16.msra.mxu0 0
      %840 = vmatpush.bf16.msra.mxu0 0
      %841 = vmatpush.bf16.msra.mxu0 0
      %842 = vmatpush.bf16.msra.mxu0 0
      %843 = vmatpush.bf16.msra.mxu0 %v831
      %844 = vmatmul.bf16.gmra.mxu0 %v834
      %v845 = vpop.f32.mrf.mxu0
      %v846 = vadd.f32 0.0, %v845
      %v847 = vpop.f32.mrf.mxu0
      %v848 = vadd.f32 0.0, %v847
      %849 = vdwg.mxu0
      %v850 = vrcp.pop %v825
      %v851 = vrcp.pop %v828
      %v852 = vmul.f32 %v846, %v850
      %v853 = vmul.f32 %v848, %v851
      %v854 = vpack.c.bf16 %v853, %v852
      %s855 = scalar_lea.vmem %s6, 16
      %v856 = vld [vmem:[%s855] sm:$0xf]
      %v857 = vld [vmem:[%s855 + $0x4] sm:$0xf]
      %v858 = vld [vmem:[%s855 + $0x8] sm:$0xf]
      %v859 = vld [vmem:[%s855 + $0xc] sm:$0xf]
      %v864 = vunpack.c.l.b16 %v856
      %v865 = vunpack.c.l.b16 %v857
      %v866 = vunpack.c.l.b16 %v858
      %v867 = vunpack.c.l.b16 %v859
      %v868 = vpack.c.b16 %v865, %v864
      %v869 = vpack.c.b16 %v867, %v866
      %v873 = vsel %vm714, %v854, 0
      %875 = vmatpush.bf16.msra.mxu0 0
      %876 = vmatpush.bf16.msra.mxu0 0
      %877 = vmatpush.bf16.msra.mxu0 0
      %878 = vmatpush.bf16.msra.mxu0 0
      %879 = vmatpush.bf16.msra.mxu0 0
      %880 = vmatpush.bf16.msra.mxu0 0
      %881 = vmatpush.bf16.msra.mxu0 %v869
      %882 = vmatpush.bf16.msra.mxu0 %v868
      %883 = vmatmul.bf16.gmra.mxu0 %v873
      %v884 = vpop.f32.mrf.mxu0
      %v885 = vadd.f32 0.0, %v884
      %v886 = vpop.f32.mrf.mxu0
      %v887 = vadd.f32 0.0, %v886
      %888 = vdwg.mxu0
      %v893 = vunpack.c.l.b16 %v783
      %v894 = vunpack.c.l.b16 %v784
      %v895 = vunpack.c.l.b16 %v785
      %v896 = vunpack.c.l.b16 %v786
      %v897 = vpack.c.b16 %v894, %v893
      %v898 = vpack.c.b16 %v896, %v895
      %v902 = vsel %vm714, %v782, 0
      %904 = vmatpush.bf16.msra.mxu0 0
      %905 = vmatpush.bf16.msra.mxu0 0
      %906 = vmatpush.bf16.msra.mxu0 0
      %907 = vmatpush.bf16.msra.mxu0 0
      %908 = vmatpush.bf16.msra.mxu0 0
      %909 = vmatpush.bf16.msra.mxu0 0
      %910 = vmatpush.bf16.msra.mxu0 %v898
      %911 = vmatpush.bf16.msra.mxu0 %v897
      %912 = vmatmul.bf16.gmra.mxu0 %v902
      %v913 = vpop.f32.mrf.mxu0
      %v914 = vadd.f32 %v885, %v913
      %v915 = vpop.f32.mrf.mxu0
      %v916 = vadd.f32 %v887, %v915
      %917 = vdwg.mxu0
      %918 = vrot.lane.b32.xlu0 %v708, 64
      %v919 = vpop.permute.xlu0 %918
      %920 = vrot.lane.b32.xlu0 %v713, 64
      %v921 = vpop.permute.xlu0 %920
      %v923 = vsel %vm714, %v919, 0
      %v926 = vsel %vm714, %v921, 0
      %928 = vmatpush.bf16.xpose.msra.mxu0 0
      %929 = vmatpush.bf16.xpose.msra.mxu0 0
      %930 = vmatpush.bf16.xpose.msra.mxu0 0
      %931 = vmatpush.bf16.xpose.msra.mxu0 0
      %932 = vmatpush.bf16.xpose.msra.mxu0 0
      %933 = vmatpush.bf16.xpose.msra.mxu0 0
      %934 = vmatpush.bf16.xpose.msra.mxu0 0
      %935 = vmatpush.bf16.xpose.msra.mxu0 %v926
      %936 = vmatmul.bf16.gmra.mxu0 %v923
      %v937 = vpop.f32.mrf.mxu0
      %v938 = vadd.f32 0.0, %v937
      %v939 = vpop.f32.mrf.mxu0
      %v940 = vadd.f32 0.0, %v939
      %941 = vdwg.mxu0
      %v942 = vsel %vm735, %v938, -inf
      %943 = vmax.xlane.f32.xlu0 %v942
      %v944 = vpop.xlane.xlu0 %943
      %v945 = vsel %vm735, %v940, -inf
      %946 = vmax.xlane.f32.xlu0 %v945
      %v947 = vpop.xlane.xlu0 %946
      %v948 = vsub.f32 %v938, %v944
      %v949 = vsub.f32 %v940, %v947
      %v950 = vmul.f32 %v948, 1.442695
      %v951 = vpow.pop %v950
      %v952 = vmul.f32 %v949, 1.442695
      %v953 = vpow.pop %v952
      %v954 = vsel %vm735, %v951, 0.0
      %955 = vadd.xlane.f32.xlu0 %v954
      %v956 = vpop.xlane.xlu0 %955
      %v957 = vsel %vm735, %v953, 0.0
      %958 = vadd.xlane.f32.xlu0 %v957
      %v959 = vpop.xlane.xlu0 %958
      %v960 = vpack.c.bf16 %v953, %v951
      %961 = vrot.lane.b32.xlu0 %v759, 64
      %v962 = vpop.permute.xlu0 %961
      %v965 = vsel %vm735, %v960, 0
      %967 = vmatpush.bf16.msra.mxu0 0
      %968 = vmatpush.bf16.msra.mxu0 0
      %969 = vmatpush.bf16.msra.mxu0 0
      %970 = vmatpush.bf16.msra.mxu0 0
      %971 = vmatpush.bf16.msra.mxu0 0
      %972 = vmatpush.bf16.msra.mxu0 0
      %973 = vmatpush.bf16.msra.mxu0 0
      %974 = vmatpush.bf16.msra.mxu0 %v962
      %975 = vmatmul.bf16.gmra.mxu0 %v965
      %v976 = vpop.f32.mrf.mxu0
      %v977 = vadd.f32 0.0, %v976
      %v978 = vpop.f32.mrf.mxu0
      %v979 = vadd.f32 0.0, %v978
      %980 = vdwg.mxu0
      %v981 = vrcp.pop %v956
      %v982 = vrcp.pop %v959
      %v983 = vmul.f32 %v977, %v981
      %v984 = vmul.f32 %v979, %v982
      %v985 = vpack.c.bf16 %v984, %v983
      %s986 = scalar_lea.vmem %s6, 32
      %v987 = vld [vmem:[%s986] sm:$0xf]
      %v988 = vld [vmem:[%s986 + $0x4] sm:$0xf]
      %v989 = vld [vmem:[%s986 + $0x8] sm:$0xf]
      %v990 = vld [vmem:[%s986 + $0xc] sm:$0xf]
      %v995 = vunpack.c.l.b16 %v987
      %v996 = vunpack.c.l.b16 %v988
      %v997 = vunpack.c.l.b16 %v989
      %v998 = vunpack.c.l.b16 %v990
      %v999 = vpack.c.b16 %v996, %v995
      %v1000 = vpack.c.b16 %v998, %v997
      %v1004 = vsel %vm714, %v985, 0
      %1006 = vmatpush.bf16.msra.mxu0 0
      %1007 = vmatpush.bf16.msra.mxu0 0
      %1008 = vmatpush.bf16.msra.mxu0 0
      %1009 = vmatpush.bf16.msra.mxu0 0
      %1010 = vmatpush.bf16.msra.mxu0 0
      %1011 = vmatpush.bf16.msra.mxu0 0
      %1012 = vmatpush.bf16.msra.mxu0 %v1000
      %1013 = vmatpush.bf16.msra.mxu0 %v999
      %1014 = vmatmul.bf16.gmra.mxu0 %v1004
      %v1015 = vpop.f32.mrf.mxu0
      %v1016 = vadd.f32 0.0, %v1015
      %v1017 = vpop.f32.mrf.mxu0
      %v1018 = vadd.f32 0.0, %v1017
      %1019 = vdwg.mxu0
      %v1020 = vadd.f32 %v914, %v1016
      %v1021 = vadd.f32 %v916, %v1018
      %1022 = vrot.lane.b32.xlu0 %v708, 32
      %v1023 = vpop.permute.xlu0 %1022
      %1024 = vrot.lane.b32.xlu0 %v713, 32
      %v1025 = vpop.permute.xlu0 %1024
      %v1027 = vsel %vm714, %v1023, 0
      %v1030 = vsel %vm714, %v1025, 0
      %1032 = vmatpush.bf16.xpose.msra.mxu0 0
      %1033 = vmatpush.bf16.xpose.msra.mxu0 0
      %1034 = vmatpush.bf16.xpose.msra.mxu0 0
      %1035 = vmatpush.bf16.xpose.msra.mxu0 0
      %1036 = vmatpush.bf16.xpose.msra.mxu0 0
      %1037 = vmatpush.bf16.xpose.msra.mxu0 0
      %1038 = vmatpush.bf16.xpose.msra.mxu0 0
      %1039 = vmatpush.bf16.xpose.msra.mxu0 %v1030
      %1040 = vmatmul.bf16.gmra.mxu0 %v1027
      %v1041 = vpop.f32.mrf.mxu0
      %v1042 = vadd.f32 0.0, %v1041
      %v1043 = vpop.f32.mrf.mxu0
      %v1044 = vadd.f32 0.0, %v1043
      %1045 = vdwg.mxu0
      %v1046 = vsel %vm735, %v1042, -inf
      %1047 = vmax.xlane.f32.xlu0 %v1046
      %v1048 = vpop.xlane.xlu0 %1047
      %v1049 = vsel %vm735, %v1044, -inf
      %1050 = vmax.xlane.f32.xlu0 %v1049
      %v1051 = vpop.xlane.xlu0 %1050
      %v1052 = vsub.f32 %v1042, %v1048
      %v1053 = vsub.f32 %v1044, %v1051
      %v1054 = vmul.f32 %v1052, 1.442695
      %v1055 = vpow.pop %v1054
      %v1056 = vmul.f32 %v1053, 1.442695
      %v1057 = vpow.pop %v1056
      %v1058 = vsel %vm735, %v1055, 0.0
      %1059 = vadd.xlane.f32.xlu0 %v1058
      %v1060 = vpop.xlane.xlu0 %1059
      %v1061 = vsel %vm735, %v1057, 0.0
      %1062 = vadd.xlane.f32.xlu0 %v1061
      %v1063 = vpop.xlane.xlu0 %1062
      %v1064 = vpack.c.bf16 %v1057, %v1055
      %1065 = vrot.lane.b32.xlu0 %v759, 32
      %v1066 = vpop.permute.xlu0 %1065
      %v1069 = vsel %vm735, %v1064, 0
      %1071 = vmatpush.bf16.msra.mxu0 0
      %1072 = vmatpush.bf16.msra.mxu0 0
      %1073 = vmatpush.bf16.msra.mxu0 0
      %1074 = vmatpush.bf16.msra.mxu0 0
      %1075 = vmatpush.bf16.msra.mxu0 0
      %1076 = vmatpush.bf16.msra.mxu0 0
      %1077 = vmatpush.bf16.msra.mxu0 0
      %1078 = vmatpush.bf16.msra.mxu0 %v1066
      %1079 = vmatmul.bf16.gmra.mxu0 %v1069
      %v1080 = vpop.f32.mrf.mxu0
      %v1081 = vadd.f32 0.0, %v1080
      %v1082 = vpop.f32.mrf.mxu0
      %v1083 = vadd.f32 0.0, %v1082
      %1084 = vdwg.mxu0
      %v1085 = vrcp.pop %v1060
      %v1086 = vrcp.pop %v1063
      %v1087 = vmul.f32 %v1081, %v1085
      %v1088 = vmul.f32 %v1083, %v1086
      %v1089 = vpack.c.bf16 %v1088, %v1087
      %s1090 = scalar_lea.vmem %s6, 48
      %v1091 = vld [vmem:[%s1090] sm:$0xf]
      %v1092 = vld [vmem:[%s1090 + $0x4] sm:$0xf]
      %v1093 = vld [vmem:[%s1090 + $0x8] sm:$0xf]
      %v1094 = vld [vmem:[%s1090 + $0xc] sm:$0xf]
      %v1099 = vunpack.c.l.b16 %v1091
      %v1100 = vunpack.c.l.b16 %v1092
      %v1101 = vunpack.c.l.b16 %v1093
      %v1102 = vunpack.c.l.b16 %v1094
      %v1103 = vpack.c.b16 %v1100, %v1099
      %v1104 = vpack.c.b16 %v1102, %v1101
      %v1108 = vsel %vm714, %v1089, 0
      %1110 = vmatpush.bf16.msra.mxu0 0
      %1111 = vmatpush.bf16.msra.mxu0 0
      %1112 = vmatpush.bf16.msra.mxu0 0
      %1113 = vmatpush.bf16.msra.mxu0 0
      %1114 = vmatpush.bf16.msra.mxu0 0
      %1115 = vmatpush.bf16.msra.mxu0 0
      %1116 = vmatpush.bf16.msra.mxu0 %v1104
      %1117 = vmatpush.bf16.msra.mxu0 %v1103
      %1118 = vmatmul.bf16.gmra.mxu0 %v1108
      %v1119 = vpop.f32.mrf.mxu0
      %v1120 = vadd.f32 0.0, %v1119
      %v1121 = vpop.f32.mrf.mxu0
      %v1122 = vadd.f32 0.0, %v1121
      %1123 = vdwg.mxu0
      %v1124 = vadd.f32 %v1020, %v1120
      %v1125 = vadd.f32 %v1021, %v1122
      %v1126 = vld [vmem:[%s10] sm:$0x1]
      %v1128 = vperm.slane %v1126, 0
      %v1130 = vadd.f32 %v1124, %v1128
      %v1131 = vadd.f32 %v1125, %v1128
      %1132 = vst [vmem:[%s426] sm:$0xff] %v1130
      %1133 = vst [vmem:[%s426 + $0x8] sm:$0xff] %v1131
      %p1134 = scmp.lt.s32.totalorder %s22, 1
      %s1135 = scalar_select %p1134, %s22, 1
      %s1136 = smul.addr %s1135, 2
      %s1137 = smul.addr %s1136, 8
      %s1138 = scalar_lea.vmem %s11, %s1137
      // Predicated region
      $region65: #{multi_headed_attention2_forward.1} parent=63 // pred_check
        %p1139 = pneg %p286
      $region66: #{multi_headed_attention2_forward.1} parent=63 // pred_check_branch
        %1141 = sbr.rel (%p1139) target = $region68
      $region67: #{multi_headed_attention2_forward.1} parent=63 // pred_region
        _
      $region68: #{multi_headed_attention2_forward.1} parent=63 // pred_fallthru
        _
    $region64: #{multi_headed_attention2_forward.1} parent=5 // pred_fallthru
      _
    %p1142 = scmp.le.s32.totalorder 2, %s17
    // Predicated region
    $region69: #{multi_headed_attention2_forward.1} parent=5 // pred_check
      %p1143 = pneg %p1142
    $region70: #{multi_headed_attention2_forward.1} parent=5 // pred_check_branch
      %1145 = sbr.rel (%p1143) target = $region72
    $region71: #{multi_headed_attention2_forward.1} parent=5 // pred_region
      %s1146 = ssub.s32 %s17, 2
      // Predicated region
      $region73: #{multi_headed_attention2_forward.1} parent=71 // pred_check
        %p1147 = pneg %p292
      $region74: #{multi_headed_attention2_forward.1} parent=71 // pred_check_branch
        %1149 = sbr.rel (%p1147) target = $region76
      $region75: #{multi_headed_attention2_forward.1} parent=71 // pred_region
        %p1150 = scmp.lt.s32.totalorder %s23, 1
        %s1151 = scalar_select %p1150, %s23, 1
        %s1152 = smul.addr %s1151, 2
        %s1153 = smul.addr %s1152, 8
        %s1154 = scalar_lea.vmem %s11, %s1153
      $region76: #{multi_headed_attention2_forward.1} parent=71 // pred_fallthru
        _
    $region72: #{multi_headed_attention2_forward.1} parent=5 // pred_fallthru
      _
  $region6: #{multi_headed_attention2_forward.1} parent=0 // loop_footer
    %s21 = sadd.s32 1, %s17
  $region7: #{multi_headed_attention2_forward.1} parent=0 // loop_footer_branch
    %16 = sbr.rel target = $region3
  $region8: #{multi_headed_attention2_forward.1} parent=0 // loop_exit
    _

</llo_original>
